<compile_context>
chip_gen: v7x
topology: tpu7x:2x2x1
jax: 0.10.0
libtpu: 0.0.40
codegen_flags: <defaults>
</compile_context>

<pallas_src>
import functools

import jax
import jax.numpy as jnp
import numpy as np
from jax.experimental import pallas as pl
from jax.experimental.pallas import tpu as pltpu


def _dense_block_kernel(x_ref, xprev_ref, mask_ref, wp_ref, wc_ref, b_ref,
                        o_ref, *, input_size, filter_size):
    """One (batch row, time tile).

    x_ref     : (C, tL)    current-tap input x(t) (also the pass-through rows)
    xprev_ref : (C, tL)    dilation-shifted input x(t - d)
    mask_ref  : (1, tL)    1.0 where (t - d) lies inside the same segment
    wp_ref    : (2F, C)    [w1_tap0 ; w2_tap0]
    wc_ref    : (2F, C)    [w1_tap1 ; w2_tap1]
    b_ref     : (2F, 1)    [b1 ; b2]
    o_ref     : (C+F, tL)  fused output: rows [ x ; tanh(xf) * sigmoid(xg) ]
    """
    x = x_ref[...]                                   # (C, tL)
    xprev = xprev_ref[...] * mask_ref[...]           # VPU: per-segment left pad
    mm_dtype = wp_ref.dtype                          # bf16 path when requested
    r = (jnp.dot(wp_ref[...], xprev.astype(mm_dtype),
                 preferred_element_type=jnp.float32)
         + jnp.dot(wc_ref[...], x.astype(mm_dtype),
                   preferred_element_type=jnp.float32)
         + b_ref[...])                               # (2F, tL) f32
    xf = r[:filter_size, :]
    xg = r[filter_size:, :]
    # Fused channel concat: pass-through rows straight from VMEM, then gates.
    o_ref[:input_size, :] = x.astype(o_ref.dtype)
    o_ref[input_size:, :] = (jnp.tanh(xf) * jax.nn.sigmoid(xg)).astype(o_ref.dtype)


def dense_block_forward(x, frame_no, w1, b1, w2, b2, dilation, *,
                        tile_l=2048, mxu_dtype=None):
    """x: (N, C, L) or (C, L) float32; frame_no: (L,) int.
    Returns (output, frame_no) with output shaped (N, C+F, L) (or (C+F, L))."""
    squeeze = (x.ndim == 2)
    if squeeze:
        x = x[None]
    N, C, L = x.shape
    F = w1.shape[0]
    dtype = x.dtype
    itemsize = jnp.dtype(dtype).itemsize

    # ---- segment-aware causal mask (tiny, single XLA pass) -------------------
    t = jnp.arange(L)
    is_start = (frame_no == 1) | (t == 0)
    seg_start = jax.lax.cummax(jnp.where(is_start, t, 0))
    mask = ((t - dilation) >= seg_start).astype(dtype)[None, :]      # (1, L)

    # ---- dilation-shifted tap, block-aligned with x (left region is masked) --
    x_prev = jnp.pad(x, ((0, 0), (0, 0), (dilation, 0)))[:, :, :L]   # (N, C, L)

    # ---- per-tap fused weights: rows [conv1 ; conv2] --------------------------
    w_dtype = dtype if mxu_dtype is None else mxu_dtype
    w_prev = jnp.concatenate([w1[:, :, 0], w2[:, :, 0]], axis=0).astype(w_dtype)
    w_cur = jnp.concatenate([w1[:, :, 1], w2[:, :, 1]], axis=0).astype(w_dtype)
    b_cat = jnp.concatenate([b1, b2]).astype(jnp.float32)[:, None]   # (2F, 1)

    # ---- time tiling: no tail pad, no output slice (ragged last block) -------
    tile_l = max(128, (tile_l // 128) * 128)
    # Cap the double-buffered per-tile footprint (x + x_prev + mask + out) well
    # under v7x's scoped-VMEM budget (64 MiB physical / 32 MiB default scoped).
    lane_bytes = 2 * (2 * C + (C + F) + 1) * itemsize
    vmem_budget = 24 * 1024 * 1024
    tile_l = min(tile_l, max(128, (vmem_budget // lane_bytes) // 128 * 128))

    tl = L if L <= tile_l else tile_l
    num_tiles = pl.cdiv(L, tl)
    # v7x has 2 TensorCores sharded over "parallel" axes: ensure >= 2 grid steps.
    if N * num_tiles < 2 and L >= 256:
        tl = max(128, (L // 2) // 128 * 128)
        num_tiles = pl.cdiv(L, tl)

    cost = pl.CostEstimate(
        flops=int(2 * N * L * (2 * F) * (2 * C)),
        transcendentals=int(2 * N * F * L),
        bytes_accessed=int(itemsize * (N * L * (2 * C + C + F) + L)
                           + 4 * (4 * F * C + 2 * F)),
    )

    kernel = functools.partial(_dense_block_kernel,
                               input_size=C, filter_size=F)
    out = pl.pallas_call(
        kernel,
        out_shape=jax.ShapeDtypeStruct((N, C + F, L), dtype),
        grid=(N, num_tiles),
        in_specs=[
            pl.BlockSpec((pl.Squeezed(), C, tl), lambda n, l: (n, 0, l)),   # x
            pl.BlockSpec((pl.Squeezed(), C, tl), lambda n, l: (n, 0, l)),   # x_prev
            pl.BlockSpec((1, tl), lambda n, l: (0, l)),                     # mask
            pl.BlockSpec((2 * F, C), lambda n, l: (0, 0)),                  # w tap0
            pl.BlockSpec((2 * F, C), lambda n, l: (0, 0)),                  # w tap1
            pl.BlockSpec((2 * F, 1), lambda n, l: (0, 0)),                  # bias
        ],
        out_specs=pl.BlockSpec((pl.Squeezed(), C + F, tl),
                               lambda n, l: (n, 0, l)),
        compiler_params=pltpu.CompilerParams(
            dimension_semantics=("parallel", "parallel")),
        cost_estimate=cost,
    )(x, x_prev, mask, w_prev, w_cur, b_cat)

    if squeeze:
        out = out[0]
    return out, frame_no


def reference_forward_numpy(x, frame_no, w1, b1, w2, b2, dilation):
    """Direct NumPy port of the PyTorch forward (InferenceMode.NONE path)."""
    x = np.asarray(x, dtype=np.float32)
    fn = np.asarray(frame_no)
    w1 = np.asarray(w1); w2 = np.asarray(w2)
    b1 = np.asarray(b1); b2 = np.asarray(b2)
    squeeze = (x.ndim == 2)
    if squeeze:
        x = x[None]
    L = x.shape[2]
    starts = list(np.nonzero(fn == 1)[0])
    if len(starts) == 0 or starts[0] != 0:
        starts = [0] + starts
    ends = starts[1:] + [L]

    def sigmoid(v):
        return 1.0 / (1.0 + np.exp(-v))

    outs = []
    for s, e in zip(starts, ends):
        seg = x[:, :, s:e]
        Ls = seg.shape[2]
        pad = np.concatenate(
            [np.zeros((seg.shape[0], seg.shape[1], dilation), np.float32), seg],
            axis=2)
        xf = (np.einsum('fc,nct->nft', w1[:, :, 0], pad[:, :, :Ls])
              + np.einsum('fc,nct->nft', w1[:, :, 1], pad[:, :, dilation:dilation + Ls])
              + b1[None, :, None])
        xg = (np.einsum('fc,nct->nft', w2[:, :, 0], pad[:, :, :Ls])
              + np.einsum('fc,nct->nft', w2[:, :, 1], pad[:, :, dilation:dilation + Ls])
              + b2[None, :, None])
        act = np.tanh(xf) * sigmoid(xg)
        outs.append(np.concatenate([seg, act], axis=1))
    out = np.concatenate(outs, axis=2)
    if squeeze:
        out = out[0]
    return out


if __name__ == "__main__":
    dilation = 2
    input_size = 4      # C
    filter_size = 8     # F
    batch = 2           # N
    seq = 16            # L

    key = jax.random.PRNGKey(0)
    kx, k1, k2, k3, k4 = jax.random.split(key, 5)

    # Deterministic parameter init (Conv1d default: U(-1/sqrt(C*K), 1/sqrt(C*K)))
    bound = 1.0 / np.sqrt(input_size * 2)
    w1 = jax.random.uniform(k1, (filter_size, input_size, 2), jnp.float32, -bound, bound)
    b1 = jax.random.uniform(k2, (filter_size,), jnp.float32, -bound, bound)
    w2 = jax.random.uniform(k3, (filter_size, input_size, 2), jnp.float32, -bound, bound)
    b2 = jax.random.uniform(k4, (filter_size,), jnp.float32, -bound, bound)

    x = jax.random.normal(kx, (batch, input_size, seq), jnp.float32)
    # two segments of length 8 each (frame_no == 1 marks segment starts)
    frame_no = jnp.concatenate([jnp.arange(1, seq // 2 + 1, dtype=jnp.int32),
                                jnp.arange(1, seq // 2 + 1, dtype=jnp.int32)])

    out, fn_out = dense_block_forward(x, frame_no, w1, b1, w2, b2, dilation)
    out = jax.block_until_ready(out)

    ref = reference_forward_numpy(x, frame_no, w1, b1, w2, b2, dilation)
    np.testing.assert_allclose(np.asarray(out), ref, rtol=1e-5, atol=2e-5)
    assert out.shape == (batch, input_size + filter_size, seq)
    print("KERNEL_OK")
</pallas_src>

<mosaic_0001>
module attributes {stable_mosaic.version = 11 : i64} {
  func.func @_dense_block_kernel(%arg0: i32, %arg1: i32, %arg2: memref<1x4x16xf32, #tpu.memory_space<vmem>>, %arg3: memref<1x4x16xf32, #tpu.memory_space<vmem>>, %arg4: memref<1x16xf32, #tpu.memory_space<vmem>>, %arg5: memref<16x4xf32, #tpu.memory_space<vmem>>, %arg6: memref<16x4xf32, #tpu.memory_space<vmem>>, %arg7: memref<16x1xf32, #tpu.memory_space<vmem>>, %arg8: memref<1x12x16xf32, #tpu.memory_space<vmem>>) attributes {dimension_semantics = [#tpu.dimension_semantics<parallel>, #tpu.dimension_semantics<parallel>], iteration_bounds = array<i64: 2, 1>, scalar_prefetch = 0 : i64, scratch_operands = 0 : i64, tpu.core_type = #tpu.core_type<tc>, window_params = [{transform_indices = @transform_0, window_bounds = array<i64: 1, 4, 16>}, {transform_indices = @transform_1, window_bounds = array<i64: 1, 4, 16>}, {transform_indices = @transform_2, window_bounds = array<i64: 1, 16>}, {pipeline_mode = #tpu.pipeline_mode<synchronous>, transform_indices = @transform_3, window_bounds = array<i64: 16, 4>}, {pipeline_mode = #tpu.pipeline_mode<synchronous>, transform_indices = @transform_4, window_bounds = array<i64: 16, 4>}, {pipeline_mode = #tpu.pipeline_mode<synchronous>, transform_indices = @transform_5, window_bounds = array<i64: 16, 1>}, {transform_indices = @transform_6, window_bounds = array<i64: 1, 12, 16>}]} {
    %c0 = arith.constant 0 : index
    %c0_0 = arith.constant 0 : index
    %c0_1 = arith.constant 0 : index
    %0 = vector.load %arg2[%c0, %c0_0, %c0_1] : memref<1x4x16xf32, #tpu.memory_space<vmem>>, vector<1x4x16xf32>
    %1 = vector.shape_cast %0 : vector<1x4x16xf32> to vector<4x16xf32>
    %c0_2 = arith.constant 0 : index
    %c0_3 = arith.constant 0 : index
    %c0_4 = arith.constant 0 : index
    %2 = vector.load %arg3[%c0_2, %c0_3, %c0_4] : memref<1x4x16xf32, #tpu.memory_space<vmem>>, vector<1x4x16xf32>
    %3 = vector.shape_cast %2 : vector<1x4x16xf32> to vector<4x16xf32>
    %c0_5 = arith.constant 0 : index
    %c0_6 = arith.constant 0 : index
    %4 = vector.load %arg4[%c0_5, %c0_6] : memref<1x16xf32, #tpu.memory_space<vmem>>, vector<1x16xf32>
    %5 = vector.broadcast %4 : vector<1x16xf32> to vector<4x16xf32>
    %6 = arith.mulf %3, %5 : vector<4x16xf32>
    %c0_7 = arith.constant 0 : index
    %c0_8 = arith.constant 0 : index
    %7 = vector.load %arg5[%c0_7, %c0_8] : memref<16x4xf32, #tpu.memory_space<vmem>>, vector<16x4xf32>
    %cst = arith.constant dense<0.000000e+00> : vector<16x16xf32>
    %8 = tpu.matmul %7, %6, %cst {dimension_numbers = #tpu.dot_dimension_numbers<[1], [0], [0], [1], [0, 0, 1, 1], [], []>} : vector<16x4xf32>, vector<4x16xf32>, vector<16x16xf32> -> vector<16x16xf32>
    %c0_9 = arith.constant 0 : index
    %c0_10 = arith.constant 0 : index
    %9 = vector.load %arg6[%c0_9, %c0_10] : memref<16x4xf32, #tpu.memory_space<vmem>>, vector<16x4xf32>
    %cst_11 = arith.constant dense<0.000000e+00> : vector<16x16xf32>
    %10 = tpu.matmul %9, %1, %cst_11 {dimension_numbers = #tpu.dot_dimension_numbers<[1], [0], [0], [1], [0, 0, 1, 1], [], []>} : vector<16x4xf32>, vector<4x16xf32>, vector<16x16xf32> -> vector<16x16xf32>
    %11 = arith.addf %8, %10 : vector<16x16xf32>
    %c0_12 = arith.constant 0 : index
    %c0_13 = arith.constant 0 : index
    %12 = vector.load %arg7[%c0_12, %c0_13] : memref<16x1xf32, #tpu.memory_space<vmem>>, vector<16x1xf32>
    %13 = vector.broadcast %12 : vector<16x1xf32> to vector<16x16xf32>
    %14 = arith.addf %11, %13 : vector<16x16xf32>
    %15 = vector.extract_strided_slice %14 {offsets = [0, 0], sizes = [8, 16], strides = [1, 1]} : vector<16x16xf32> to vector<8x16xf32>
    %16 = vector.extract_strided_slice %14 {offsets = [8, 0], sizes = [8, 16], strides = [1, 1]} : vector<16x16xf32> to vector<8x16xf32>
    %c0_14 = arith.constant 0 : index
    %c0_15 = arith.constant 0 : index
    %c0_16 = arith.constant 0 : index
    %17 = vector.load %arg8[%c0_14, %c0_15, %c0_16] : memref<1x12x16xf32, #tpu.memory_space<vmem>>, vector<1x4x16xf32>
    %18 = vector.shape_cast %17 : vector<1x4x16xf32> to vector<4x16xf32>
    %19 = vector.shape_cast %1 : vector<4x16xf32> to vector<1x4x16xf32>
    tpu.vector_store %arg8[%c0_14, %c0_15, %c0_16], %19 {strides = array<i32>} : memref<1x12x16xf32, #tpu.memory_space<vmem>>, vector<1x4x16xf32>,
    %20 = math.tanh %15 : vector<8x16xf32>
    %21 = arith.negf %16 : vector<8x16xf32>
    %22 = math.exp %21 : vector<8x16xf32>
    %cst_17 = arith.constant 1.000000e+00 : f32
    %23 = vector.broadcast %cst_17 : f32 to vector<8x16xf32>
    %24 = arith.addf %23, %22 : vector<8x16xf32>
    %25 = arith.divf %23, %24 : vector<8x16xf32>
    %26 = arith.mulf %20, %25 : vector<8x16xf32>
    %c0_18 = arith.constant 0 : index
    %c4 = arith.constant 4 : index
    %c0_19 = arith.constant 0 : index
    %27 = vector.load %arg8[%c0_18, %c4, %c0_19] : memref<1x12x16xf32, #tpu.memory_space<vmem>>, vector<1x8x16xf32>
    %28 = vector.shape_cast %27 : vector<1x8x16xf32> to vector<8x16xf32>
    %29 = vector.shape_cast %26 : vector<8x16xf32> to vector<1x8x16xf32>
    tpu.vector_store %arg8[%c0_18, %c4, %c0_19], %29 {strides = array<i32>} : memref<1x12x16xf32, #tpu.memory_space<vmem>>, vector<1x8x16xf32>,
    return
  }
  func.func @transform_0(%arg0: i32, %arg1: i32) -> (i32, i32, i32) {
    %c0_i32 = arith.constant 0 : i32
    %c0_i32_0 = arith.constant 0 : i32
    return %arg0, %c0_i32, %arg1 : i32, i32, i32
  }
  func.func @transform_1(%arg0: i32, %arg1: i32) -> (i32, i32, i32) {
    %c0_i32 = arith.constant 0 : i32
    %c0_i32_0 = arith.constant 0 : i32
    return %arg0, %c0_i32, %arg1 : i32, i32, i32
  }
  func.func @transform_2(%arg0: i32, %arg1: i32) -> (i32, i32) {
    %c0_i32 = arith.constant 0 : i32
    %c0_i32_0 = arith.constant 0 : i32
    return %c0_i32, %arg1 : i32, i32
  }
  func.func @transform_3(%arg0: i32, %arg1: i32) -> (i32, i32) {
    %c0_i32 = arith.constant 0 : i32
    %c0_i32_0 = arith.constant 0 : i32
    %c0_i32_1 = arith.constant 0 : i32
    return %c0_i32, %c0_i32_0 : i32, i32
  }
  func.func @transform_4(%arg0: i32, %arg1: i32) -> (i32, i32) {
    %c0_i32 = arith.constant 0 : i32
    %c0_i32_0 = arith.constant 0 : i32
    %c0_i32_1 = arith.constant 0 : i32
    return %c0_i32, %c0_i32_0 : i32, i32
  }
  func.func @transform_5(%arg0: i32, %arg1: i32) -> (i32, i32) {
    %c0_i32 = arith.constant 0 : i32
    %c0_i32_0 = arith.constant 0 : i32
    %c0_i32_1 = arith.constant 0 : i32
    return %c0_i32, %c0_i32_0 : i32, i32
  }
  func.func @transform_6(%arg0: i32, %arg1: i32) -> (i32, i32, i32) {
    %c0_i32 = arith.constant 0 : i32
    %c0_i32_0 = arith.constant 0 : i32
    return %arg0, %c0_i32, %arg1 : i32, i32, i32
  }
}

</mosaic_0001>

<llo_original>
// kernel: tpu_custom_call.1
$region0: #{tpu_custom_call.1}
  #allocation0 [shape = 'u32[]', space=smem, size = 0x4, offset = 0x4, fixed_abs, tag = 'smem constant byte address 0x4 - core index']
  #allocation1 [shape = 'u32[144,128]{1,0:T(1,128)}', space=vmem, size = 0x12000, scoped, tag = 'internal scratch']
  %s0 = inlined_call_operand.vmem [shape: f32[2,4,16], index: 0, kind: input, shape index: {}]
  %s1 = inlined_call_operand.vmem [shape: f32[2,4,16], index: 1, kind: input, shape index: {}]
  %s2 = inlined_call_operand.vmem [shape: f32[1,16], index: 2, kind: input, shape index: {}]
  %s3 = inlined_call_operand.vmem [shape: f32[16,4], index: 3, kind: input, shape index: {}]
  %s4 = inlined_call_operand.vmem [shape: f32[16,4], index: 4, kind: input, shape index: {}]
  %s5 = inlined_call_operand.vmem [shape: f32[16,1], index: 5, kind: input, shape index: {}]
  %s6 = inlined_call_operand.vmem [shape: f32[2,12,16], index: 6, kind: output, shape index: {}]
  %s7 = sld [smem:[#allocation0]]
  $region57: #{tpu_custom_call.1} parent=0
    _
  %s9 = ssub.s32 1, %s7
  %s10 = scalar_select 0, %s9, %s7
  loop: start=0, step=1, limit=4
  $region2: #{tpu_custom_call.1} parent=0 // loop_pre_header
    _
  $region3: #{tpu_custom_call.1} parent=0 // loop_header
    %s12 = sphi 0, %s16
    %p13 = scmp.ge.s32.totalorder %s12, 4
    %s19 = sphi 0, %s31
    %s20 = sphi 0, %s27
    %s21 = sphi 0, %s19
    %s22 = sphi 0, %s20
    %s23 = sphi 0, %s21
    %s24 = sphi 0, %s22
    %s36 = sphi 0, %s38
    %s39 = sphi 0, %s36
    %s40 = sphi 0, %s39
    %s56 = sphi 0, %s40
    %s64 = sphi 0, %s66
    %s67 = sphi 0, %s64
    %s68 = sphi 0, %s67
    %s84 = sphi 0, %s68
    %s90 = sphi 0, %s92
    %s93 = sphi 0, %s90
    %s94 = sphi 0, %s93
    %s110 = sphi 0, %s94
    %s114 = sphi 0, %s114
    %s116 = sphi 0, %s114
    %s117 = sphi 0, %s116
    %s131 = sphi 0, %s117
    %s135 = sphi 0, %s135
    %s137 = sphi 0, %s135
    %s138 = sphi 0, %s137
    %s152 = sphi 0, %s138
    %s156 = sphi 0, %s156
    %s158 = sphi 0, %s156
    %s159 = sphi 0, %s158
    %s173 = sphi 0, %s159
    %s181 = sphi 0, %s183
    %s184 = sphi 0, %s181
    %s185 = sphi 0, %s184
    %s201 = sphi 0, %s185
  $region4: #{tpu_custom_call.1} parent=0 // loop_header_branch
    %15 = sbr.rel (%p13) target = $region8
  $region5: #{tpu_custom_call.1} parent=0 // loop_body
    %s17 = ssub.s32 %s12, 1
    %s18 = ssub.s32 %s12, 2
    %s25 = sadd.s32 1, %s20
    %p26 = scmp.ge.s32.totalorder %s25, 1
    %s27 = scalar_select %p26, 0, %s25
    %s28 = sadd.s32 1, %s19
    %s29 = scalar_select %p26, %s28, %s19
    %p30 = scmp.ge.s32.totalorder %s29, 2
    %s31 = scalar_select %p30, 0, %s29
    %s32 = ssub.s32 %s19, %s31
    %s33 = ssub.s32 %s20, %s27
    %s34 = sor.u32 %s32, %s33
    %p35 = scmp.eq.s32.totalorder %s34, 0
    %s37 = sadd.s32 %s36, 1
    %s38 = scalar_select %p35, %s36, %s37
    %p41 = pneg %p35
    %p42 = scmp.eq.s32.totalorder %s12, 1
    %p43 = por %p41, %p42
    %p44 = scmp.ne.s32.totalorder %s36, %s39
    %p45 = scmp.eq.s32.totalorder %s12, 0
    %p46 = por %p44, %p45
    %p47 = scmp.ne.s32.totalorder %s36, %s39
    %p48 = scmp.eq.s32.totalorder %s17, 1
    %p49 = por %p47, %p48
    %p50 = scmp.ne.s32.totalorder %s39, %s40
    %p51 = scmp.eq.s32.totalorder %s17, 0
    %p52 = por %p50, %p51
    %p53 = scmp.ne.s32.totalorder %s39, %s40
    %p54 = scmp.eq.s32.totalorder %s18, 1
    %p55 = por %p53, %p54
    %p57 = scmp.ne.s32.totalorder %s40, %s56
    %p58 = scmp.eq.s32.totalorder %s18, 0
    %p59 = por %p57, %p58
    %s60 = ssub.s32 %s19, %s31
    %s61 = ssub.s32 %s20, %s27
    %s62 = sor.u32 %s60, %s61
    %p63 = scmp.eq.s32.totalorder %s62, 0
    %s65 = sadd.s32 %s64, 1
    %s66 = scalar_select %p63, %s64, %s65
    %p69 = pneg %p63
    %p70 = scmp.eq.s32.totalorder %s12, 1
    %p71 = por %p69, %p70
    %p72 = scmp.ne.s32.totalorder %s64, %s67
    %p73 = scmp.eq.s32.totalorder %s12, 0
    %p74 = por %p72, %p73
    %p75 = scmp.ne.s32.totalorder %s64, %s67
    %p76 = scmp.eq.s32.totalorder %s17, 1
    %p77 = por %p75, %p76
    %p78 = scmp.ne.s32.totalorder %s67, %s68
    %p79 = scmp.eq.s32.totalorder %s17, 0
    %p80 = por %p78, %p79
    %p81 = scmp.ne.s32.totalorder %s67, %s68
    %p82 = scmp.eq.s32.totalorder %s18, 1
    %p83 = por %p81, %p82
    %p85 = scmp.ne.s32.totalorder %s68, %s84
    %p86 = scmp.eq.s32.totalorder %s18, 0
    %p87 = por %p85, %p86
    %s88 = ssub.s32 %s20, %s27
    %p89 = scmp.eq.s32.totalorder %s88, 0
    %s91 = sadd.s32 %s90, 1
    %s92 = scalar_select %p89, %s90, %s91
    %p95 = pneg %p89
    %p96 = scmp.eq.s32.totalorder %s12, 1
    %p97 = por %p95, %p96
    %p98 = scmp.ne.s32.totalorder %s90, %s93
    %p99 = scmp.eq.s32.totalorder %s12, 0
    %p100 = por %p98, %p99
    %p101 = scmp.ne.s32.totalorder %s90, %s93
    %p102 = scmp.eq.s32.totalorder %s17, 1
    %p103 = por %p101, %p102
    %p104 = scmp.ne.s32.totalorder %s93, %s94
    %p105 = scmp.eq.s32.totalorder %s17, 0
    %p106 = por %p104, %p105
    %p107 = scmp.ne.s32.totalorder %s93, %s94
    %p108 = scmp.eq.s32.totalorder %s18, 1
    %p109 = por %p107, %p108
    %p111 = scmp.ne.s32.totalorder %s94, %s110
    %p112 = scmp.eq.s32.totalorder %s18, 0
    %p113 = por %p111, %p112
    %s115 = sadd.s32 %s114, 1
    %p118 = scmp.eq.s32.totalorder %s12, 1
    %p119 = scmp.ne.s32.totalorder %s114, %s116
    %p120 = scmp.eq.s32.totalorder %s12, 0
    %p121 = por %p119, %p120
    %p122 = scmp.ne.s32.totalorder %s114, %s116
    %p123 = scmp.eq.s32.totalorder %s17, 1
    %p124 = por %p122, %p123
    %p125 = scmp.ne.s32.totalorder %s116, %s117
    %p126 = scmp.eq.s32.totalorder %s17, 0
    %p127 = por %p125, %p126
    %p128 = scmp.ne.s32.totalorder %s116, %s117
    %p129 = scmp.eq.s32.totalorder %s18, 1
    %p130 = por %p128, %p129
    %p132 = scmp.ne.s32.totalorder %s117, %s131
    %p133 = scmp.eq.s32.totalorder %s18, 0
    %p134 = por %p132, %p133
    %s136 = sadd.s32 %s135, 1
    %p139 = scmp.eq.s32.totalorder %s12, 1
    %p140 = scmp.ne.s32.totalorder %s135, %s137
    %p141 = scmp.eq.s32.totalorder %s12, 0
    %p142 = por %p140, %p141
    %p143 = scmp.ne.s32.totalorder %s135, %s137
    %p144 = scmp.eq.s32.totalorder %s17, 1
    %p145 = por %p143, %p144
    %p146 = scmp.ne.s32.totalorder %s137, %s138
    %p147 = scmp.eq.s32.totalorder %s17, 0
    %p148 = por %p146, %p147
    %p149 = scmp.ne.s32.totalorder %s137, %s138
    %p150 = scmp.eq.s32.totalorder %s18, 1
    %p151 = por %p149, %p150
    %p153 = scmp.ne.s32.totalorder %s138, %s152
    %p154 = scmp.eq.s32.totalorder %s18, 0
    %p155 = por %p153, %p154
    %s157 = sadd.s32 %s156, 1
    %p160 = scmp.eq.s32.totalorder %s12, 1
    %p161 = scmp.ne.s32.totalorder %s156, %s158
    %p162 = scmp.eq.s32.totalorder %s12, 0
    %p163 = por %p161, %p162
    %p164 = scmp.ne.s32.totalorder %s156, %s158
    %p165 = scmp.eq.s32.totalorder %s17, 1
    %p166 = por %p164, %p165
    %p167 = scmp.ne.s32.totalorder %s158, %s159
    %p168 = scmp.eq.s32.totalorder %s17, 0
    %p169 = por %p167, %p168
    %p170 = scmp.ne.s32.totalorder %s158, %s159
    %p171 = scmp.eq.s32.totalorder %s18, 1
    %p172 = por %p170, %p171
    %p174 = scmp.ne.s32.totalorder %s159, %s173
    %p175 = scmp.eq.s32.totalorder %s18, 0
    %p176 = por %p174, %p175
    %s177 = ssub.s32 %s19, %s31
    %s178 = ssub.s32 %s20, %s27
    %s179 = sor.u32 %s177, %s178
    %p180 = scmp.eq.s32.totalorder %s179, 0
    %s182 = sadd.s32 %s181, 1
    %s183 = scalar_select %p180, %s181, %s182
    %p186 = pneg %p180
    %p187 = scmp.eq.s32.totalorder %s12, 1
    %p188 = por %p186, %p187
    %p189 = scmp.ne.s32.totalorder %s181, %s184
    %p190 = scmp.eq.s32.totalorder %s12, 0
    %p191 = por %p189, %p190
    %p192 = scmp.ne.s32.totalorder %s181, %s184
    %p193 = scmp.eq.s32.totalorder %s17, 1
    %p194 = por %p192, %p193
    %p195 = scmp.ne.s32.totalorder %s184, %s185
    %p196 = scmp.eq.s32.totalorder %s17, 0
    %p197 = por %p195, %p196
    %p198 = scmp.ne.s32.totalorder %s184, %s185
    %p199 = scmp.eq.s32.totalorder %s18, 1
    %p200 = por %p198, %p199
    %p202 = scmp.ne.s32.totalorder %s185, %s201
    %p203 = scmp.eq.s32.totalorder %s18, 0
    %p204 = por %p202, %p203
    %p205 = scmp.le.s32.totalorder 1, %s12
    %p206 = scmp.lt.s32.totalorder %s12, 3
    %p207 = pnand %p205, %p206
    %p208 = pneg %p207
    // Predicated region
    $region9: #{tpu_custom_call.1} parent=5 // pred_check
      _
    $region10: #{tpu_custom_call.1} parent=5 // pred_check_branch
      %210 = sbr.rel (%p207) target = $region12
    $region11: #{tpu_custom_call.1} parent=5 // pred_region
      %s211 = ssub.s32 %s12, 1
      // Predicated region
      $region13: #{tpu_custom_call.1} parent=11 // pred_check
        %p212 = pneg %p106
      $region14: #{tpu_custom_call.1} parent=11 // pred_check_branch
        %214 = sbr.rel (%p212) target = $region16
      $region15: #{tpu_custom_call.1} parent=11 // pred_region
        %p215 = scmp.lt.s32.totalorder %s22, 0
        %s216 = scalar_select %p215, %s22, 0
        %s217 = scalar_lea.vmem %s2, %s216
      $region16: #{tpu_custom_call.1} parent=11 // pred_fallthru
        _
      // Predicated region
      $region17: #{tpu_custom_call.1} parent=11 // pred_check
        %p218 = pneg %p127
      $region18: #{tpu_custom_call.1} parent=11 // pred_check_branch
        %220 = sbr.rel (%p218) target = $region20
      $region19: #{tpu_custom_call.1} parent=11 // pred_region
        _
      $region20: #{tpu_custom_call.1} parent=11 // pred_fallthru
        _
      // Predicated region
      $region21: #{tpu_custom_call.1} parent=11 // pred_check
        %p221 = pneg %p148
      $region22: #{tpu_custom_call.1} parent=11 // pred_check_branch
        %223 = sbr.rel (%p221) target = $region24
      $region23: #{tpu_custom_call.1} parent=11 // pred_region
        _
      $region24: #{tpu_custom_call.1} parent=11 // pred_fallthru
        _
      // Predicated region
      $region25: #{tpu_custom_call.1} parent=11 // pred_check
        %p224 = pneg %p169
      $region26: #{tpu_custom_call.1} parent=11 // pred_check_branch
        %226 = sbr.rel (%p224) target = $region28
      $region27: #{tpu_custom_call.1} parent=11 // pred_region
        _
      $region28: #{tpu_custom_call.1} parent=11 // pred_fallthru
        _
    $region12: #{tpu_custom_call.1} parent=5 // pred_fallthru
      _
    %p227 = scmp.lt.s32.totalorder %s12, 2
    // Predicated region
    $region29: #{tpu_custom_call.1} parent=5 // pred_check
      %p228 = pneg %p227
    $region30: #{tpu_custom_call.1} parent=5 // pred_check_branch
      %230 = sbr.rel (%p228) target = $region32
    $region31: #{tpu_custom_call.1} parent=5 // pred_region
      // Predicated region
      $region33: #{tpu_custom_call.1} parent=31 // pred_check
        %p231 = pneg %p46
      $region34: #{tpu_custom_call.1} parent=31 // pred_check_branch
        %233 = sbr.rel (%p231) target = $region36
      $region35: #{tpu_custom_call.1} parent=31 // pred_region
        %p234 = scmp.lt.s32.totalorder %s19, 1
        %s235 = scalar_select %p234, %s19, 1
        %p236 = scmp.lt.s32.totalorder %s20, 0
        %s237 = scalar_select %p236, %s20, 0
        %s238 = sadd.s32 %s237, %s235
        %s239 = smul.addr %s238, 4
        %s240 = scalar_lea.vmem %s0, %s239
      $region36: #{tpu_custom_call.1} parent=31 // pred_fallthru
        _
      // Predicated region
      $region37: #{tpu_custom_call.1} parent=31 // pred_check
        %p241 = pneg %p74
      $region38: #{tpu_custom_call.1} parent=31 // pred_check_branch
        %243 = sbr.rel (%p241) target = $region40
      $region39: #{tpu_custom_call.1} parent=31 // pred_region
        %p244 = scmp.lt.s32.totalorder %s19, 1
        %s245 = scalar_select %p244, %s19, 1
        %p246 = scmp.lt.s32.totalorder %s20, 0
        %s247 = scalar_select %p246, %s20, 0
        %s248 = sadd.s32 %s247, %s245
        %s249 = smul.addr %s248, 4
        %s250 = scalar_lea.vmem %s1, %s249
      $region40: #{tpu_custom_call.1} parent=31 // pred_fallthru
        _
    $region32: #{tpu_custom_call.1} parent=5 // pred_fallthru
      _
    %p251 = scmp.le.s32.totalorder 1, %s12
    %p252 = scmp.lt.s32.totalorder %s12, 3
    %p253 = pnand %p251, %p252
    %p254 = pneg %p253
    // Predicated region
    $region41: #{tpu_custom_call.1} parent=5 // pred_check
      _
    $region42: #{tpu_custom_call.1} parent=5 // pred_check_branch
      %256 = sbr.rel (%p253) target = $region44
    $region43: #{tpu_custom_call.1} parent=5 // pred_region
      %s257 = ssub.s32 %s12, 1
      %p258 = scmp.lt.s32.totalorder %s21, 1
      %s259 = scalar_select %p258, %s21, 1
      %p260 = scmp.lt.s32.totalorder %s22, 0
      %s261 = scalar_select %p260, %s22, 0
      %s262 = sadd.s32 %s261, %s259
      %s263 = smul.addr %s262, 4
      %s264 = scalar_lea.vmem %s0, %s263
      %p265 = pneg %p52
      %p266 = pneg %p49
      %p267 = scmp.lt.s32.totalorder %s21, 1
      %s268 = scalar_select %p267, %s21, 1
      %p269 = scmp.lt.s32.totalorder %s22, 0
      %s270 = scalar_select %p269, %s22, 0
      %s271 = sadd.s32 %s270, %s268
      %s272 = smul.addr %s271, 4
      %s273 = scalar_lea.vmem %s1, %s272
      %p274 = pneg %p80
      %p275 = pneg %p77
      %p276 = scmp.lt.s32.totalorder %s22, 0
      %s277 = scalar_select %p276, %s22, 0
      %s278 = scalar_lea.vmem %s2, %s277
      %p279 = pneg %p106
      %p280 = pneg %p103
      %p281 = pneg %p127
      %p282 = pneg %p124
      %p283 = pneg %p148
      %p284 = pneg %p145
      %p285 = pneg %p169
      %p286 = pneg %p166
      %p287 = pneg %p197
      %p288 = pneg %p194
      %p289 = scmp.lt.s32.totalorder %s21, 1
      %s290 = scalar_select %p289, %s21, 1
      %p291 = scmp.lt.s32.totalorder %s22, 0
      %s292 = scalar_select %p291, %s22, 0
      %s293 = smul.addr %s290, 2
      %s294 = sadd.s32 %s292, %s293
      %s295 = smul.addr %s294, 8
      %s296 = scalar_lea.vmem %s6, %s295
      %p297 = scmp.lt.s32.totalorder %s21, 1
      %s298 = scalar_select %p297, %s21, 1
      %p299 = scmp.lt.s32.totalorder %s22, 0
      %s300 = scalar_select %p299, %s22, 0
      %s301 = sadd.s32 %s300, %s298
      %s302 = smul.addr %s301, 4
      %s303 = scalar_lea.vmem %s0, %s302
      %p304 = scmp.lt.s32.totalorder %s21, 1
      %s305 = scalar_select %p304, %s21, 1
      %p306 = scmp.lt.s32.totalorder %s22, 0
      %s307 = scalar_select %p306, %s22, 0
      %s308 = sadd.s32 %s307, %s305
      %s309 = smul.addr %s308, 4
      %s310 = scalar_lea.vmem %s1, %s309
      %p311 = scmp.lt.s32.totalorder %s22, 0
      %s312 = scalar_select %p311, %s22, 0
      %s313 = scalar_lea.vmem %s2, %s312
      %p314 = scmp.lt.s32.totalorder %s21, 1
      %s315 = scalar_select %p314, %s21, 1
      %p316 = scmp.lt.s32.totalorder %s22, 0
      %s317 = scalar_select %p316, %s22, 0
      %s318 = smul.addr %s315, 2
      %s319 = sadd.s32 %s317, %s318
      %s320 = smul.addr %s319, 8
      %s321 = scalar_lea.vmem %s6, %s320
      %v322 = vld [vmem:[%s303] sm:$0xf]
      %v323 = vld [vmem:[%s310] sm:$0xf]
      %v324 = vld [vmem:[%s313] sm:$0x1]
      %v326 = vlaneseq
      %v327 = vshrl.u32 %v326, 7
      %v328 = vsub.s32 0, %v327
      %v329 = vrot.slane %v324, %v328
      %v331 = vmul.f32 %v323, %v329
      %v332 = vld [vmem:[%s3] sm:$0xff]
      %v333 = vld [vmem:[%s3 + $0x8] sm:$0xff]
      %v334 = vld [vmem:[%s4] sm:$0xff]
      %v335 = vld [vmem:[%s4 + $0x8] sm:$0xff]
      %vm336 = vcmask 31744
      %v338 = vsel %vm336, %v334, 0
      %v341 = vsel %vm336, %v335, 0
      %vm343 = vcmask 1043456
      %v345 = vsel %vm343, %v322, 0
      %347 = vmatprep.subr.mxu0 0.0
      %348 = vmatpush1.msra.mxu0 %v345
      %349 = vmatprep.subr.mxu0 0.0
      %350 = vmatpush1.msra.mxu0 0.0
      %351 = vmatprep.subr.mxu0 0.0
      %352 = vmatpush1.msra.mxu0 0.0
      %353 = vmatprep.subr.mxu0 0.0
      %354 = vmatpush1.msra.mxu0 0.0
      %355 = vmatprep.subr.mxu0 0.0
      %356 = vmatpush1.msra.mxu0 0.0
      %357 = vmatprep.subr.mxu0 0.0
      %358 = vmatpush1.msra.mxu0 0.0
      %359 = vmatprep.subr.mxu0 0.0
      %360 = vmatpush1.msra.mxu0 0.0
      %361 = vmatprep.subr.mxu0 0.0
      %362 = vmatpush1.msra.mxu0 0.0
      %363 = vmatprep.subr.mxu0 0.0
      %364 = vmatpush1.msra.mxu0 0.0
      %365 = vmatprep.subr.mxu0 0.0
      %366 = vmatpush1.msra.mxu0 0.0
      %367 = vmatprep.subr.mxu0 0.0
      %368 = vmatpush1.msra.mxu0 0.0
      %369 = vmatprep.subr.mxu0 0.0
      %370 = vmatpush1.msra.mxu0 0.0
      %371 = vmatprep.subr.mxu0 0.0
      %372 = vmatpush1.msra.mxu0 0.0
      %373 = vmatprep.subr.mxu0 0.0
      %374 = vmatpush1.msra.mxu0 0.0
      %375 = vmatprep.subr.mxu0 0.0
      %376 = vmatpush1.msra.mxu0 0.0
      %377 = vmatprep.subr.mxu0 0.0
      %378 = vmatpush1.msra.mxu0 0.0
      %379 = vmatprep.subr.mxu0 0.0
      %380 = vmatpush1.msra.mxu0 0.0
      %381 = vmatprep.subr.mxu0 0.0
      %382 = vmatpush1.msra.mxu0 0.0
      %383 = vmatprep.subr.mxu0 0.0
      %384 = vmatpush1.msra.mxu0 0.0
      %385 = vmatprep.subr.mxu0 0.0
      %386 = vmatpush1.msra.mxu0 0.0
      %387 = vmatprep.subr.mxu0 0.0
      %388 = vmatpush1.msra.mxu0 0.0
      %389 = vmatprep.subr.mxu0 0.0
      %390 = vmatpush1.msra.mxu0 0.0
      %391 = vmatprep.subr.mxu0 0.0
      %392 = vmatpush1.msra.mxu0 0.0
      %393 = vmatprep.subr.mxu0 0.0
      %394 = vmatpush1.msra.mxu0 0.0
      %395 = vmatprep.subr.mxu0 0.0
      %396 = vmatpush1.msra.mxu0 0.0
      %397 = vmatprep.subr.mxu0 0.0
      %398 = vmatpush1.msra.mxu0 0.0
      %399 = vmatprep.subr.mxu0 0.0
      %400 = vmatpush1.msra.mxu0 0.0
      %401 = vmatprep.subr.mxu0 0.0
      %402 = vmatpush1.msra.mxu0 0.0
      %403 = vmatprep.subr.mxu0 0.0
      %404 = vmatpush1.msra.mxu0 0.0
      %405 = vmatprep.subr.mxu0 0.0
      %406 = vmatpush1.msra.mxu0 0.0
      %407 = vmatprep.subr.mxu0 0.0
      %408 = vmatpush1.msra.mxu0 0.0
      %409 = vmatprep.subr.mxu0 0.0
      %410 = vmatpush1.msra.mxu0 0.0
      %411 = vmatprep.mubr.f32.mxu0 0.0
      %412 = vmatmul.mubr.f32.gmra.mrb[0].mxu0 %v338
      %v413 = vpop.f32.mrb[0].mxu0
      %v414 = vadd.f32 0.0, %v413
      %v415 = vpop.f32.mrb[0].mxu0
      %416 = vmatprep.mubr.f32.mxu0 0.0
      %417 = vmatmul.mubr.f32.gmra.mrb[0].mxu0 %v341
      %v418 = vpop.f32.mrb[0].mxu0
      %v419 = vadd.f32 0.0, %v418
      %v420 = vpop.f32.mrb[0].mxu0
      %421 = vdwg.mxu0
      %v423 = vsel %vm336, %v332, 0
      %v426 = vsel %vm336, %v333, 0
      %v429 = vsel %vm343, %v331, 0
      %431 = vmatprep.subr.mxu0 0.0
      %432 = vmatpush1.msra.mxu0 %v429
      %433 = vmatprep.subr.mxu0 0.0
      %434 = vmatpush1.msra.mxu0 0.0
      %435 = vmatprep.subr.mxu0 0.0
      %436 = vmatpush1.msra.mxu0 0.0
      %437 = vmatprep.subr.mxu0 0.0
      %438 = vmatpush1.msra.mxu0 0.0
      %439 = vmatprep.subr.mxu0 0.0
      %440 = vmatpush1.msra.mxu0 0.0
      %441 = vmatprep.subr.mxu0 0.0
      %442 = vmatpush1.msra.mxu0 0.0
      %443 = vmatprep.subr.mxu0 0.0
      %444 = vmatpush1.msra.mxu0 0.0
      %445 = vmatprep.subr.mxu0 0.0
      %446 = vmatpush1.msra.mxu0 0.0
      %447 = vmatprep.subr.mxu0 0.0
      %448 = vmatpush1.msra.mxu0 0.0
      %449 = vmatprep.subr.mxu0 0.0
      %450 = vmatpush1.msra.mxu0 0.0
      %451 = vmatprep.subr.mxu0 0.0
      %452 = vmatpush1.msra.mxu0 0.0
      %453 = vmatprep.subr.mxu0 0.0
      %454 = vmatpush1.msra.mxu0 0.0
      %455 = vmatprep.subr.mxu0 0.0
      %456 = vmatpush1.msra.mxu0 0.0
      %457 = vmatprep.subr.mxu0 0.0
      %458 = vmatpush1.msra.mxu0 0.0
      %459 = vmatprep.subr.mxu0 0.0
      %460 = vmatpush1.msra.mxu0 0.0
      %461 = vmatprep.subr.mxu0 0.0
      %462 = vmatpush1.msra.mxu0 0.0
      %463 = vmatprep.subr.mxu0 0.0
      %464 = vmatpush1.msra.mxu0 0.0
      %465 = vmatprep.subr.mxu0 0.0
      %466 = vmatpush1.msra.mxu0 0.0
      %467 = vmatprep.subr.mxu0 0.0
      %468 = vmatpush1.msra.mxu0 0.0
      %469 = vmatprep.subr.mxu0 0.0
      %470 = vmatpush1.msra.mxu0 0.0
      %471 = vmatprep.subr.mxu0 0.0
      %472 = vmatpush1.msra.mxu0 0.0
      %473 = vmatprep.subr.mxu0 0.0
      %474 = vmatpush1.msra.mxu0 0.0
      %475 = vmatprep.subr.mxu0 0.0
      %476 = vmatpush1.msra.mxu0 0.0
      %477 = vmatprep.subr.mxu0 0.0
      %478 = vmatpush1.msra.mxu0 0.0
      %479 = vmatprep.subr.mxu0 0.0
      %480 = vmatpush1.msra.mxu0 0.0
      %481 = vmatprep.subr.mxu0 0.0
      %482 = vmatpush1.msra.mxu0 0.0
      %483 = vmatprep.subr.mxu0 0.0
      %484 = vmatpush1.msra.mxu0 0.0
      %485 = vmatprep.subr.mxu0 0.0
      %486 = vmatpush1.msra.mxu0 0.0
      %487 = vmatprep.subr.mxu0 0.0
      %488 = vmatpush1.msra.mxu0 0.0
      %489 = vmatprep.subr.mxu0 0.0
      %490 = vmatpush1.msra.mxu0 0.0
      %491 = vmatprep.subr.mxu0 0.0
      %492 = vmatpush1.msra.mxu0 0.0
      %493 = vmatprep.subr.mxu0 0.0
      %494 = vmatpush1.msra.mxu0 0.0
      %495 = vmatprep.mubr.f32.mxu0 0.0
      %496 = vmatmul.mubr.f32.gmra.mrb[0].mxu0 %v423
      %v497 = vpop.f32.mrb[0].mxu0
      %v498 = vadd.f32 %v414, %v497
      %v499 = vpop.f32.mrb[0].mxu0
      %500 = vmatprep.mubr.f32.mxu0 0.0
      %501 = vmatmul.mubr.f32.gmra.mrb[0].mxu0 %v426
      %v502 = vpop.f32.mrb[0].mxu0
      %v503 = vadd.f32 %v419, %v502
      %v504 = vpop.f32.mrb[0].mxu0
      %505 = vdwg.mxu0
      %v506 = vld [vmem:[%s5] sm:$0xff]
      %v507 = vld [vmem:[%s5 + $0x8] sm:$0xff]
      %509 = vset.pattern.permute.xlu0 0
      %510 = vperm.xlu0 %509, %v506
      %v511 = vpop.permute.xlu0 %510
      %514 = vset.pattern.permute.xlu0 0
      %515 = vperm.xlu0 %514, %v507
      %v516 = vpop.permute.xlu0 %515
      %v518 = vadd.f32 %v498, %v511
      %v519 = vadd.f32 %v503, %v516
      %vm520 = vcmask 125952
      %521 = vst.msk [vmem:[%s321] sm:$0xf] %vm520, %v322
      %v522 = vtanh.pop %v518
      %v523 = vxor.u32 %v519, 2147483648
      %v524 = vmul.f32 %v523, 1.442695
      %v525 = vpow.pop %v524
      %v526 = vadd.f32 %v525, 1.0
      %v527 = vrcp.pop %v526
      %v528 = vmul.f32 1.0, %v527
      %v529 = vmul.f32 %v522, %v528
      %vm530 = vcmask 130048
      %531 = vst.msk [vmem:[%s321 + $0x4] sm:$0xff] %vm530, %v529
      %p532 = scmp.lt.s32.totalorder %s21, 1
      %s533 = scalar_select %p532, %s21, 1
      %p534 = scmp.lt.s32.totalorder %s22, 0
      %s535 = scalar_select %p534, %s22, 0
      %s536 = smul.addr %s533, 2
      %s537 = sadd.s32 %s535, %s536
      %s538 = smul.addr %s537, 8
      %s539 = scalar_lea.vmem %s6, %s538
      // Predicated region
      $region45: #{tpu_custom_call.1} parent=43 // pred_check
        %p540 = pneg %p194
      $region46: #{tpu_custom_call.1} parent=43 // pred_check_branch
        %542 = sbr.rel (%p540) target = $region48
      $region47: #{tpu_custom_call.1} parent=43 // pred_region
        _
      $region48: #{tpu_custom_call.1} parent=43 // pred_fallthru
        _
    $region44: #{tpu_custom_call.1} parent=5 // pred_fallthru
      _
    %p543 = scmp.le.s32.totalorder 2, %s12
    // Predicated region
    $region49: #{tpu_custom_call.1} parent=5 // pred_check
      %p544 = pneg %p543
    $region50: #{tpu_custom_call.1} parent=5 // pred_check_branch
      %546 = sbr.rel (%p544) target = $region52
    $region51: #{tpu_custom_call.1} parent=5 // pred_region
      %s547 = ssub.s32 %s12, 2
      // Predicated region
      $region53: #{tpu_custom_call.1} parent=51 // pred_check
        %p548 = pneg %p200
      $region54: #{tpu_custom_call.1} parent=51 // pred_check_branch
        %550 = sbr.rel (%p548) target = $region56
      $region55: #{tpu_custom_call.1} parent=51 // pred_region
        %p551 = scmp.lt.s32.totalorder %s23, 1
        %s552 = scalar_select %p551, %s23, 1
        %p553 = scmp.lt.s32.totalorder %s24, 0
        %s554 = scalar_select %p553, %s24, 0
        %s555 = smul.addr %s552, 2
        %s556 = sadd.s32 %s554, %s555
        %s557 = smul.addr %s556, 8
        %s558 = scalar_lea.vmem %s6, %s557
      $region56: #{tpu_custom_call.1} parent=51 // pred_fallthru
        _
    $region52: #{tpu_custom_call.1} parent=5 // pred_fallthru
      _
  $region6: #{tpu_custom_call.1} parent=0 // loop_footer
    %s16 = sadd.s32 1, %s12
  $region7: #{tpu_custom_call.1} parent=0 // loop_footer_branch
    %11 = sbr.rel target = $region3
  $region8: #{tpu_custom_call.1} parent=0 // loop_exit
    _

</llo_original>
